<compile_context>
chip_gen: v6e
topology: v6e:2x2x1
jax: 0.10.0
libtpu: 0.0.40
codegen_flags: <defaults>
</compile_context>

<pallas_src>
import jax
import jax.numpy as jnp
from jax.experimental import pallas as pl
from jax.experimental.pallas import tpu as pltpu


def _dwt_haar_kernel(x_ref, wt_ref, o_ref):
    """One grid step: TR packed row-pairs -> all 4 Haar subbands (packed on lanes).

    x_ref : (TR, 2W)  each row = [even image row (W) | odd image row (W)]
    wt_ref: (W, W)    fused, scaled Haar width analysis matrix (cols [0:W/2]=low, [W/2:W]=high)
    o_ref : (TR, 2W)  lanes [0:W] = low-H result, [W:2W] = high-H result
                      (within each half: [0:W/2]=low-W, [W/2:W]=high-W)
    """
    w = wt_ref.shape[0]
    x = x_ref[...].astype(jnp.float32)
    even = x[:, :w]                      # original even rows
    odd = x[:, w:]                       # original odd rows
    # Height filter directly on the VPU (sqrt(2) scale folded into wt).
    lo = even + odd
    hi = even - odd
    wt = wt_ref[...]
    # Width filter (both low & high bands at once) on the MXU.
    ylo = jnp.dot(lo, wt, preferred_element_type=jnp.float32)
    yhi = jnp.dot(hi, wt, preferred_element_type=jnp.float32)
    o_ref[:, :w] = ylo.astype(o_ref.dtype)
    o_ref[:, w:] = yhi.astype(o_ref.dtype)


def _haar_width_matrix(w):
    """Fused Haar width analysis matrix (W, W) in f32, entries +-0.5.

    Columns [0:W/2] = lowpass, [W/2:W] = highpass; the two 1/sqrt(2) scales of the
    separable 2D transform are folded in (so the height filter is a pure add/sub).
    """
    k = jnp.arange(w // 2)
    m = jnp.zeros((w, w), jnp.float32)
    m = m.at[2 * k, k].set(0.5).at[2 * k + 1, k].set(0.5)
    m = m.at[2 * k, w // 2 + k].set(0.5).at[2 * k + 1, w // 2 + k].set(-0.5)
    return m


def _pick_row_tile(r, w, itemsize, budget_bytes=16 << 20):
    """Rows (width 2W) per grid step: multiple of 8 dividing r, within VMEM budget."""
    # double-buffered input + output blocks plus in-kernel f32 temps, per row
    per_row = 4 * (2 * w) * itemsize + 4 * w * 4
    cap = max(1, budget_bytes // per_row)
    if r <= cap:
        return r
    tr = min(r, (cap // 8) * 8)
    while tr >= 8 and r % tr:
        tr -= 8
    return tr if tr >= 8 else r


def dwt2_haar_level1(x):
    """Single-level 2D Haar DWT via Pallas. x: (N, C, H, W) -> (N, C, 4, H/2, W/2).

    Band order: [LL, LH(high-H/low-W), HL(low-H/high-W), HH] == (yl, yh[0][:,:,0:3]).
    """
    n, c, h, w = x.shape
    assert h % 2 == 0 and w % 2 == 0
    b = n * c
    r = b * (h // 2)
    # Pack each consecutive row pair onto the lane axis (free, contiguous reshape).
    xrows = x.reshape(r, 2 * w)
    # TODO(synk): verify high-pass sign convention against real pytorch_wavelets/pywt
    # (pywt haar dec_hi = [-1/sqrt2, +1/sqrt2]); bands here match the in-script reference.
    # TODO(synk): for very large W (>~2k) replace the dense (W,W) width filter with a
    # direct lane sum/diff path to avoid O(W^2) filter VMEM and FLOPs.
    wt = _haar_width_matrix(w)
    tr = _pick_row_tile(r, w, x.dtype.itemsize)

    out = pl.pallas_call(
        _dwt_haar_kernel,
        out_shape=jax.ShapeDtypeStruct((r, 2 * w), x.dtype),
        grid=(r // tr,),
        in_specs=[
            pl.BlockSpec((tr, 2 * w), lambda i: (i, 0)),     # row-pair tile
            pl.BlockSpec((w, w), lambda i: (0, 0)),          # constant fused filter
        ],
        out_specs=pl.BlockSpec((tr, 2 * w), lambda i: (i, 0)),
        compiler_params=pltpu.CompilerParams(
            dimension_semantics=("parallel",),               # shard rows across TCs (v7x)
            vmem_limit_bytes=32 * 1024 * 1024,
        ),
    )(xrows, wt)

    # Layout plumbing (XLA side): lanes are (i = low/high-H, j = low/high-W, W/2).
    out = out.reshape(b, h // 2, 2, 2, w // 2)               # (B, h/2, i, j, w/2)
    out = jnp.transpose(out, (0, 3, 2, 1, 4))                # (B, j, i, h/2, w/2)
    return out.reshape(n, c, 4, h // 2, w // 2)              # band = 2*j + i


def pytorch_dwt_full(x, level):
    """'full' mode: N x C x H x W -> N x 4**level x C x H/2**level x W/2**level.

    One pallas_call per level: all current-level coefficient maps share the same
    spatial size and are folded into the batch axis.
    """
    n, c, h, w = x.shape
    coeffs = x[:, None]                                      # (N, 1, C, H, W)
    for _ in range(level):
        p = coeffs.shape[1]
        y = dwt2_haar_level1(coeffs.reshape(n * p, c, h, w))  # (N*P, C, 4, h/2, w/2)
        h, w = h // 2, w // 2
        y = y.reshape(n, p, c, 4, h, w)
        # deque order of the torch module: for each parent map, [LL, b1, b2, b3]
        coeffs = jnp.transpose(y, (0, 1, 3, 2, 4, 5)).reshape(n, p * 4, c, h, w)
    return coeffs


def pytorch_dwt_part(x, level):
    """'part' mode: [N x 1 x C x hJ x wJ, N x 3 x C x hJ x wJ, ..., N x 3 x C x h1 x w1]."""
    lo = x
    highs = []
    for _ in range(level):
        y = dwt2_haar_level1(lo)
        lo = y[:, :, 0]
        highs.append(y[:, :, 1:])                            # (N, C, 3, h, w)
    tokens = [lo[:, None]]                                   # (N, 1, C, hJ, wJ)
    for ch in highs[::-1]:                                   # coarsest first
        tokens.append(jnp.transpose(ch, (0, 2, 1, 3, 4)))    # (N, 3, C, h, w)
    return tokens


def _ref_dwt2(x):
    """Pure-JAX reference for one Haar level (correctness check)."""
    n, c, h, w = x.shape
    xr = x.reshape(n, c, h // 2, 2, w // 2, 2)
    a = xr[:, :, :, 0, :, 0]
    b = xr[:, :, :, 0, :, 1]
    cc = xr[:, :, :, 1, :, 0]
    d = xr[:, :, :, 1, :, 1]
    ll = (a + b + cc + d) * 0.5
    b1 = (a + b - cc - d) * 0.5
    b2 = (a - b + cc - d) * 0.5
    b3 = (a - b - cc + d) * 0.5
    return jnp.stack([ll, b1, b2, b3], axis=2)


if __name__ == "__main__":
    key = jax.random.PRNGKey(0)
    N, C, H, W = 2, 4, 16, 16
    level = 2
    x = jax.random.normal(key, (N, C, H, W), dtype=jnp.float32)

    # single-level correctness check against pure-JAX reference
    y1 = jax.block_until_ready(dwt2_haar_level1(x))
    ref1 = _ref_dwt2(x)
    assert y1.shape == (N, C, 4, H // 2, W // 2)
    assert jnp.allclose(y1, ref1, atol=1e-5, rtol=1e-5)

    # mode='full'
    out_full = jax.block_until_ready(pytorch_dwt_full(x, level))
    assert out_full.shape == (N, 4 ** level, C, H // 2 ** level, W // 2 ** level)
    full1 = jax.block_until_ready(pytorch_dwt_full(x, 1))
    assert jnp.allclose(full1, jnp.transpose(ref1, (0, 2, 1, 3, 4)), atol=1e-5, rtol=1e-5)

    # mode='part'
    out_part = [jax.block_until_ready(t) for t in pytorch_dwt_part(x, level)]
    assert out_part[0].shape == (N, 1, C, H // 2 ** level, W // 2 ** level)
    assert out_part[1].shape == (N, 3, C, H // 2 ** level, W // 2 ** level)
    assert out_part[2].shape == (N, 3, C, H // 2, W // 2)

    print("KERNEL_OK")
</pallas_src>

<mosaic_0001>
module attributes {stable_mosaic.version = 11 : i64} {
  func.func @_dwt_haar_kernel(%arg0: i32, %arg1: memref<64x32xf32, #tpu.memory_space<vmem>>, %arg2: memref<16x16xf32, #tpu.memory_space<vmem>>, %arg3: memref<64x32xf32, #tpu.memory_space<vmem>>) attributes {dimension_semantics = [#tpu.dimension_semantics<parallel>], iteration_bounds = array<i64: 1>, scalar_prefetch = 0 : i64, scratch_operands = 0 : i64, tpu.core_type = #tpu.core_type<tc>, window_params = [{transform_indices = @transform_0, window_bounds = array<i64: 64, 32>}, {pipeline_mode = #tpu.pipeline_mode<synchronous>, transform_indices = @transform_1, window_bounds = array<i64: 16, 16>}, {transform_indices = @transform_2, window_bounds = array<i64: 64, 32>}]} {
    %c0 = arith.constant 0 : index
    %c0_0 = arith.constant 0 : index
    %0 = vector.load %arg1[%c0, %c0_0] : memref<64x32xf32, #tpu.memory_space<vmem>>, vector<64x32xf32>
    %1 = vector.extract_strided_slice %0 {offsets = [0, 0], sizes = [64, 16], strides = [1, 1]} : vector<64x32xf32> to vector<64x16xf32>
    %2 = vector.extract_strided_slice %0 {offsets = [0, 16], sizes = [64, 16], strides = [1, 1]} : vector<64x32xf32> to vector<64x16xf32>
    %3 = arith.addf %1, %2 : vector<64x16xf32>
    %4 = arith.subf %1, %2 : vector<64x16xf32>
    %c0_1 = arith.constant 0 : index
    %c0_2 = arith.constant 0 : index
    %5 = vector.load %arg2[%c0_1, %c0_2] : memref<16x16xf32, #tpu.memory_space<vmem>>, vector<16x16xf32>
    %cst = arith.constant dense<0.000000e+00> : vector<64x16xf32>
    %6 = tpu.matmul %3, %5, %cst {dimension_numbers = #tpu.dot_dimension_numbers<[1], [0], [0], [1], [0, 0, 1, 1], [], []>} : vector<64x16xf32>, vector<16x16xf32>, vector<64x16xf32> -> vector<64x16xf32>
    %cst_3 = arith.constant dense<0.000000e+00> : vector<64x16xf32>
    %7 = tpu.matmul %4, %5, %cst_3 {dimension_numbers = #tpu.dot_dimension_numbers<[1], [0], [0], [1], [0, 0, 1, 1], [], []>} : vector<64x16xf32>, vector<16x16xf32>, vector<64x16xf32> -> vector<64x16xf32>
    %c0_4 = arith.constant 0 : index
    %c0_5 = arith.constant 0 : index
    %8 = vector.load %arg3[%c0_4, %c0_5] : memref<64x32xf32, #tpu.memory_space<vmem>>, vector<64x16xf32>
    tpu.vector_store %arg3[%c0_4, %c0_5], %6 {strides = array<i32>} : memref<64x32xf32, #tpu.memory_space<vmem>>, vector<64x16xf32>,
    %c0_6 = arith.constant 0 : index
    %c16 = arith.constant 16 : index
    %9 = vector.load %arg3[%c0_6, %c16] : memref<64x32xf32, #tpu.memory_space<vmem>>, vector<64x16xf32>
    tpu.vector_store %arg3[%c0_6, %c16], %7 {strides = array<i32>} : memref<64x32xf32, #tpu.memory_space<vmem>>, vector<64x16xf32>,
    return
  }
  func.func @transform_0(%arg0: i32) -> (i32, i32) {
    %c0_i32 = arith.constant 0 : i32
    %c0_i32_0 = arith.constant 0 : i32
    return %arg0, %c0_i32 : i32, i32
  }
  func.func @transform_1(%arg0: i32) -> (i32, i32) {
    %c0_i32 = arith.constant 0 : i32
    %c0_i32_0 = arith.constant 0 : i32
    %c0_i32_1 = arith.constant 0 : i32
    return %c0_i32, %c0_i32_0 : i32, i32
  }
  func.func @transform_2(%arg0: i32) -> (i32, i32) {
    %c0_i32 = arith.constant 0 : i32
    %c0_i32_0 = arith.constant 0 : i32
    return %arg0, %c0_i32 : i32, i32
  }
}

</mosaic_0001>

<llo_original>
// kernel: tpu_custom_call.1
$region0: #{tpu_custom_call.1}
  #allocation0 [shape = 'u32[]', space=smem, size = 0x4, offset = 0x4, fixed_abs, tag = 'smem constant byte address 0x4 - core index']
  #allocation1 [shape = 'u32[144,128]{1,0:T(1,128)}', space=vmem, size = 0x12000, scoped, tag = 'internal scratch']
  %s0 = inlined_call_operand.vmem [shape: f32[64,32], index: 0, kind: input, shape index: {}]
  %s1 = inlined_call_operand.vmem [shape: f32[16,16], index: 1, kind: input, shape index: {}]
  %s2 = inlined_call_operand.vmem [shape: f32[64,32], index: 2, kind: output, shape index: {}]
  %s3 = sld [smem:[#allocation0]]
  $region18: #{tpu_custom_call.1} parent=0
    _
  %s5 = ssub.s32 1, %s3
  %s6 = scalar_select 0, %s5, %s3
  // Predicated region
  $region2: #{tpu_custom_call.1} parent=0 // pred_check
    _
  $region3: #{tpu_custom_call.1} parent=0 // pred_check_branch
    %8 = sbr.rel (0) target = $region5
  $region4: #{tpu_custom_call.1} parent=0 // pred_region
    _
  $region5: #{tpu_custom_call.1} parent=0 // pred_fallthru
    _
  // Predicated region
  $region6: #{tpu_custom_call.1} parent=0 // pred_check
    _
  $region7: #{tpu_custom_call.1} parent=0 // pred_check_branch
    %10 = sbr.rel (0) target = $region9
  $region8: #{tpu_custom_call.1} parent=0 // pred_region
    _
  $region9: #{tpu_custom_call.1} parent=0 // pred_fallthru
    _
  %v11 = vld [vmem:[%s0] sm:$0xff]
  %v12 = vld [vmem:[%s0 + $0x8] sm:$0xff]
  %v13 = vld [vmem:[%s0 + $0x10] sm:$0xff]
  %v14 = vld [vmem:[%s0 + $0x18] sm:$0xff]
  %v15 = vld [vmem:[%s0 + $0x20] sm:$0xff]
  %v16 = vld [vmem:[%s0 + $0x28] sm:$0xff]
  %v17 = vld [vmem:[%s0 + $0x30] sm:$0xff]
  %v18 = vld [vmem:[%s0 + $0x38] sm:$0xff]
  %27 = vrot.lane.b32.xlu0 %v11, 112
  %v28 = vpop.permute.xlu0 %27
  %29 = vrot.lane.b32.xlu0 %v12, 112
  %v30 = vpop.permute.xlu0 %29
  %31 = vrot.lane.b32.xlu0 %v13, 112
  %v32 = vpop.permute.xlu0 %31
  %33 = vrot.lane.b32.xlu0 %v14, 112
  %v34 = vpop.permute.xlu0 %33
  %35 = vrot.lane.b32.xlu0 %v15, 112
  %v36 = vpop.permute.xlu0 %35
  %37 = vrot.lane.b32.xlu0 %v16, 112
  %v38 = vpop.permute.xlu0 %37
  %39 = vrot.lane.b32.xlu0 %v17, 112
  %v40 = vpop.permute.xlu0 %39
  %41 = vrot.lane.b32.xlu0 %v18, 112
  %v42 = vpop.permute.xlu0 %41
  %v51 = vadd.f32 %v11, %v28
  %v52 = vadd.f32 %v12, %v30
  %v53 = vadd.f32 %v13, %v32
  %v54 = vadd.f32 %v14, %v34
  %v55 = vadd.f32 %v15, %v36
  %v56 = vadd.f32 %v16, %v38
  %v57 = vadd.f32 %v17, %v40
  %v58 = vadd.f32 %v18, %v42
  %v59 = vsub.f32 %v11, %v28
  %v60 = vsub.f32 %v12, %v30
  %v61 = vsub.f32 %v13, %v32
  %v62 = vsub.f32 %v14, %v34
  %v63 = vsub.f32 %v15, %v36
  %v64 = vsub.f32 %v16, %v38
  %v65 = vsub.f32 %v17, %v40
  %v66 = vsub.f32 %v18, %v42
  %v67 = vld [vmem:[%s1] sm:$0xff]
  %v68 = vld [vmem:[%s1 + $0x8] sm:$0xff]
  %vm69 = vcmask 130048
  %v71 = vsel %vm69, %v51, 0
  %v74 = vsel %vm69, %v52, 0
  %v77 = vsel %vm69, %v53, 0
  %v80 = vsel %vm69, %v54, 0
  %v83 = vsel %vm69, %v55, 0
  %v86 = vsel %vm69, %v56, 0
  %v89 = vsel %vm69, %v57, 0
  %v92 = vsel %vm69, %v58, 0
  %94 = vmatprep.subr.mxu0 0.0
  %95 = vmatpush1.msra.mxu0 0.0
  %96 = vmatprep.subr.mxu0 0.0
  %97 = vmatpush1.msra.mxu0 0.0
  %98 = vmatprep.subr.mxu0 0.0
  %99 = vmatpush1.msra.mxu0 0.0
  %100 = vmatprep.subr.mxu0 0.0
  %101 = vmatpush1.msra.mxu0 0.0
  %102 = vmatprep.subr.mxu0 0.0
  %103 = vmatpush1.msra.mxu0 0.0
  %104 = vmatprep.subr.mxu0 0.0
  %105 = vmatpush1.msra.mxu0 0.0
  %106 = vmatprep.subr.mxu0 0.0
  %107 = vmatpush1.msra.mxu0 0.0
  %108 = vmatprep.subr.mxu0 0.0
  %109 = vmatpush1.msra.mxu0 0.0
  %110 = vmatprep.subr.mxu0 0.0
  %111 = vmatpush1.msra.mxu0 0.0
  %112 = vmatprep.subr.mxu0 0.0
  %113 = vmatpush1.msra.mxu0 0.0
  %114 = vmatprep.subr.mxu0 0.0
  %115 = vmatpush1.msra.mxu0 0.0
  %116 = vmatprep.subr.mxu0 0.0
  %117 = vmatpush1.msra.mxu0 0.0
  %118 = vmatprep.subr.mxu0 0.0
  %119 = vmatpush1.msra.mxu0 0.0
  %120 = vmatprep.subr.mxu0 0.0
  %121 = vmatpush1.msra.mxu0 0.0
  %122 = vmatprep.subr.mxu0 0.0
  %123 = vmatpush1.msra.mxu0 %v68
  %124 = vmatprep.subr.mxu0 0.0
  %125 = vmatpush1.msra.mxu0 %v67
  %126 = vmatprep.subr.mxu0 0.0
  %127 = vmatpush2.msra.mxu0 0.0
  %128 = vmatprep.subr.mxu0 0.0
  %129 = vmatpush2.msra.mxu0 0.0
  %130 = vmatprep.subr.mxu0 0.0
  %131 = vmatpush2.msra.mxu0 0.0
  %132 = vmatprep.subr.mxu0 0.0
  %133 = vmatpush2.msra.mxu0 0.0
  %134 = vmatprep.subr.mxu0 0.0
  %135 = vmatpush2.msra.mxu0 0.0
  %136 = vmatprep.subr.mxu0 0.0
  %137 = vmatpush2.msra.mxu0 0.0
  %138 = vmatprep.subr.mxu0 0.0
  %139 = vmatpush2.msra.mxu0 0.0
  %140 = vmatprep.subr.mxu0 0.0
  %141 = vmatpush2.msra.mxu0 0.0
  %142 = vmatprep.subr.mxu0 0.0
  %143 = vmatpush2.msra.mxu0 0.0
  %144 = vmatprep.subr.mxu0 0.0
  %145 = vmatpush2.msra.mxu0 0.0
  %146 = vmatprep.subr.mxu0 0.0
  %147 = vmatpush2.msra.mxu0 0.0
  %148 = vmatprep.subr.mxu0 0.0
  %149 = vmatpush2.msra.mxu0 0.0
  %150 = vmatprep.subr.mxu0 0.0
  %151 = vmatpush2.msra.mxu0 0.0
  %152 = vmatprep.subr.mxu0 0.0
  %153 = vmatpush2.msra.mxu0 0.0
  %154 = vmatprep.subr.mxu0 0.0
  %155 = vmatpush2.msra.mxu0 0.0
  %156 = vmatprep.subr.mxu0 0.0
  %157 = vmatpush2.msra.mxu0 0.0
  %158 = vmatprep.mubr.f32.mxu0 0.0
  %159 = vmatmul.mubr.f32.gmra.mxu0 %v71
  %v160 = vpop.f32.mrf.mxu0
  %v161 = vadd.f32 0.0, %v160
  %v162 = vpop.f32.mrf.mxu0
  %163 = vmatprep.mubr.f32.mxu0 0.0
  %164 = vmatmul.mubr.f32.gmra.mxu0 %v74
  %v165 = vpop.f32.mrf.mxu0
  %v166 = vadd.f32 0.0, %v165
  %v167 = vpop.f32.mrf.mxu0
  %168 = vmatprep.mubr.f32.mxu0 0.0
  %169 = vmatmul.mubr.f32.gmra.mxu0 %v77
  %v170 = vpop.f32.mrf.mxu0
  %v171 = vadd.f32 0.0, %v170
  %v172 = vpop.f32.mrf.mxu0
  %173 = vmatprep.mubr.f32.mxu0 0.0
  %174 = vmatmul.mubr.f32.gmra.mxu0 %v80
  %v175 = vpop.f32.mrf.mxu0
  %v176 = vadd.f32 0.0, %v175
  %v177 = vpop.f32.mrf.mxu0
  %178 = vmatprep.mubr.f32.mxu0 0.0
  %179 = vmatmul.mubr.f32.gmra.mxu0 %v83
  %v180 = vpop.f32.mrf.mxu0
  %v181 = vadd.f32 0.0, %v180
  %v182 = vpop.f32.mrf.mxu0
  %183 = vmatprep.mubr.f32.mxu0 0.0
  %184 = vmatmul.mubr.f32.gmra.mxu0 %v86
  %v185 = vpop.f32.mrf.mxu0
  %v186 = vadd.f32 0.0, %v185
  %v187 = vpop.f32.mrf.mxu0
  %188 = vmatprep.mubr.f32.mxu0 0.0
  %189 = vmatmul.mubr.f32.gmra.mxu0 %v89
  %v190 = vpop.f32.mrf.mxu0
  %v191 = vadd.f32 0.0, %v190
  %v192 = vpop.f32.mrf.mxu0
  %193 = vmatprep.mubr.f32.mxu0 0.0
  %194 = vmatmul.mubr.f32.gmra.mxu0 %v92
  %v195 = vpop.f32.mrf.mxu0
  %v196 = vadd.f32 0.0, %v195
  %v197 = vpop.f32.mrf.mxu0
  %198 = vdwg.mxu0
  %v200 = vsel %vm69, %v59, 0
  %v203 = vsel %vm69, %v60, 0
  %v206 = vsel %vm69, %v61, 0
  %v209 = vsel %vm69, %v62, 0
  %v212 = vsel %vm69, %v63, 0
  %v215 = vsel %vm69, %v64, 0
  %v218 = vsel %vm69, %v65, 0
  %v221 = vsel %vm69, %v66, 0
  %223 = vmatprep.subr.mxu0 0.0
  %224 = vmatpush1.msra.mxu0 0.0
  %225 = vmatprep.subr.mxu0 0.0
  %226 = vmatpush1.msra.mxu0 0.0
  %227 = vmatprep.subr.mxu0 0.0
  %228 = vmatpush1.msra.mxu0 0.0
  %229 = vmatprep.subr.mxu0 0.0
  %230 = vmatpush1.msra.mxu0 0.0
  %231 = vmatprep.subr.mxu0 0.0
  %232 = vmatpush1.msra.mxu0 0.0
  %233 = vmatprep.subr.mxu0 0.0
  %234 = vmatpush1.msra.mxu0 0.0
  %235 = vmatprep.subr.mxu0 0.0
  %236 = vmatpush1.msra.mxu0 0.0
  %237 = vmatprep.subr.mxu0 0.0
  %238 = vmatpush1.msra.mxu0 0.0
  %239 = vmatprep.subr.mxu0 0.0
  %240 = vmatpush1.msra.mxu0 0.0
  %241 = vmatprep.subr.mxu0 0.0
  %242 = vmatpush1.msra.mxu0 0.0
  %243 = vmatprep.subr.mxu0 0.0
  %244 = vmatpush1.msra.mxu0 0.0
  %245 = vmatprep.subr.mxu0 0.0
  %246 = vmatpush1.msra.mxu0 0.0
  %247 = vmatprep.subr.mxu0 0.0
  %248 = vmatpush1.msra.mxu0 0.0
  %249 = vmatprep.subr.mxu0 0.0
  %250 = vmatpush1.msra.mxu0 0.0
  %251 = vmatprep.subr.mxu0 0.0
  %252 = vmatpush1.msra.mxu0 %v68
  %253 = vmatprep.subr.mxu0 0.0
  %254 = vmatpush1.msra.mxu0 %v67
  %255 = vmatprep.subr.mxu0 0.0
  %256 = vmatpush2.msra.mxu0 0.0
  %257 = vmatprep.subr.mxu0 0.0
  %258 = vmatpush2.msra.mxu0 0.0
  %259 = vmatprep.subr.mxu0 0.0
  %260 = vmatpush2.msra.mxu0 0.0
  %261 = vmatprep.subr.mxu0 0.0
  %262 = vmatpush2.msra.mxu0 0.0
  %263 = vmatprep.subr.mxu0 0.0
  %264 = vmatpush2.msra.mxu0 0.0
  %265 = vmatprep.subr.mxu0 0.0
  %266 = vmatpush2.msra.mxu0 0.0
  %267 = vmatprep.subr.mxu0 0.0
  %268 = vmatpush2.msra.mxu0 0.0
  %269 = vmatprep.subr.mxu0 0.0
  %270 = vmatpush2.msra.mxu0 0.0
  %271 = vmatprep.subr.mxu0 0.0
  %272 = vmatpush2.msra.mxu0 0.0
  %273 = vmatprep.subr.mxu0 0.0
  %274 = vmatpush2.msra.mxu0 0.0
  %275 = vmatprep.subr.mxu0 0.0
  %276 = vmatpush2.msra.mxu0 0.0
  %277 = vmatprep.subr.mxu0 0.0
  %278 = vmatpush2.msra.mxu0 0.0
  %279 = vmatprep.subr.mxu0 0.0
  %280 = vmatpush2.msra.mxu0 0.0
  %281 = vmatprep.subr.mxu0 0.0
  %282 = vmatpush2.msra.mxu0 0.0
  %283 = vmatprep.subr.mxu0 0.0
  %284 = vmatpush2.msra.mxu0 0.0
  %285 = vmatprep.subr.mxu0 0.0
  %286 = vmatpush2.msra.mxu0 0.0
  %287 = vmatprep.mubr.f32.mxu0 0.0
  %288 = vmatmul.mubr.f32.gmra.mxu0 %v200
  %v289 = vpop.f32.mrf.mxu0
  %v290 = vadd.f32 0.0, %v289
  %v291 = vpop.f32.mrf.mxu0
  %292 = vmatprep.mubr.f32.mxu0 0.0
  %293 = vmatmul.mubr.f32.gmra.mxu0 %v203
  %v294 = vpop.f32.mrf.mxu0
  %v295 = vadd.f32 0.0, %v294
  %v296 = vpop.f32.mrf.mxu0
  %297 = vmatprep.mubr.f32.mxu0 0.0
  %298 = vmatmul.mubr.f32.gmra.mxu0 %v206
  %v299 = vpop.f32.mrf.mxu0
  %v300 = vadd.f32 0.0, %v299
  %v301 = vpop.f32.mrf.mxu0
  %302 = vmatprep.mubr.f32.mxu0 0.0
  %303 = vmatmul.mubr.f32.gmra.mxu0 %v209
  %v304 = vpop.f32.mrf.mxu0
  %v305 = vadd.f32 0.0, %v304
  %v306 = vpop.f32.mrf.mxu0
  %307 = vmatprep.mubr.f32.mxu0 0.0
  %308 = vmatmul.mubr.f32.gmra.mxu0 %v212
  %v309 = vpop.f32.mrf.mxu0
  %v310 = vadd.f32 0.0, %v309
  %v311 = vpop.f32.mrf.mxu0
  %312 = vmatprep.mubr.f32.mxu0 0.0
  %313 = vmatmul.mubr.f32.gmra.mxu0 %v215
  %v314 = vpop.f32.mrf.mxu0
  %v315 = vadd.f32 0.0, %v314
  %v316 = vpop.f32.mrf.mxu0
  %317 = vmatprep.mubr.f32.mxu0 0.0
  %318 = vmatmul.mubr.f32.gmra.mxu0 %v218
  %v319 = vpop.f32.mrf.mxu0
  %v320 = vadd.f32 0.0, %v319
  %v321 = vpop.f32.mrf.mxu0
  %322 = vmatprep.mubr.f32.mxu0 0.0
  %323 = vmatmul.mubr.f32.gmra.mxu0 %v221
  %v324 = vpop.f32.mrf.mxu0
  %v325 = vadd.f32 0.0, %v324
  %v326 = vpop.f32.mrf.mxu0
  %327 = vdwg.mxu0
  %328 = vst.msk [vmem:[%s2] sm:$0xff] %vm69, %v161
  %329 = vst.msk [vmem:[%s2 + $0x8] sm:$0xff] %vm69, %v166
  %330 = vst.msk [vmem:[%s2 + $0x10] sm:$0xff] %vm69, %v171
  %331 = vst.msk [vmem:[%s2 + $0x18] sm:$0xff] %vm69, %v176
  %332 = vst.msk [vmem:[%s2 + $0x20] sm:$0xff] %vm69, %v181
  %333 = vst.msk [vmem:[%s2 + $0x28] sm:$0xff] %vm69, %v186
  %334 = vst.msk [vmem:[%s2 + $0x30] sm:$0xff] %vm69, %v191
  %335 = vst.msk [vmem:[%s2 + $0x38] sm:$0xff] %vm69, %v196
  %344 = vrot.lane.b32.xlu0 %v290, 16
  %v345 = vpop.permute.xlu0 %344
  %346 = vrot.lane.b32.xlu0 %v295, 16
  %v347 = vpop.permute.xlu0 %346
  %348 = vrot.lane.b32.xlu0 %v300, 16
  %v349 = vpop.permute.xlu0 %348
  %350 = vrot.lane.b32.xlu0 %v305, 16
  %v351 = vpop.permute.xlu0 %350
  %352 = vrot.lane.b32.xlu0 %v310, 16
  %v353 = vpop.permute.xlu0 %352
  %354 = vrot.lane.b32.xlu0 %v315, 16
  %v355 = vpop.permute.xlu0 %354
  %356 = vrot.lane.b32.xlu0 %v320, 16
  %v357 = vpop.permute.xlu0 %356
  %358 = vrot.lane.b32.xlu0 %v325, 16
  %v359 = vpop.permute.xlu0 %358
  %vm368 = vcmask 261248
  %369 = vst.msk [vmem:[%s2] sm:$0xff] %vm368, %v345
  %370 = vst.msk [vmem:[%s2 + $0x8] sm:$0xff] %vm368, %v347
  %371 = vst.msk [vmem:[%s2 + $0x10] sm:$0xff] %vm368, %v349
  %372 = vst.msk [vmem:[%s2 + $0x18] sm:$0xff] %vm368, %v351
  %373 = vst.msk [vmem:[%s2 + $0x20] sm:$0xff] %vm368, %v353
  %374 = vst.msk [vmem:[%s2 + $0x28] sm:$0xff] %vm368, %v355
  %375 = vst.msk [vmem:[%s2 + $0x30] sm:$0xff] %vm368, %v357
  %376 = vst.msk [vmem:[%s2 + $0x38] sm:$0xff] %vm368, %v359
  // Predicated region
  $region10: #{tpu_custom_call.1} parent=0 // pred_check
    _
  $region11: #{tpu_custom_call.1} parent=0 // pred_check_branch
    %378 = sbr.rel (0) target = $region13
  $region12: #{tpu_custom_call.1} parent=0 // pred_region
    _
  $region13: #{tpu_custom_call.1} parent=0 // pred_fallthru
    _
  // Predicated region
  $region14: #{tpu_custom_call.1} parent=0 // pred_check
    _
  $region15: #{tpu_custom_call.1} parent=0 // pred_check_branch
    %380 = sbr.rel (0) target = $region17
  $region16: #{tpu_custom_call.1} parent=0 // pred_region
    _
  $region17: #{tpu_custom_call.1} parent=0 // pred_fallthru
    _

</llo_original>
